<compile_context>
chip_gen: v5e
topology: v5e:2x2
jax: 0.10.0
libtpu: 0.0.40
codegen_flags: <defaults>
</compile_context>

<pallas_src>
import functools

import jax
import jax.numpy as jnp
from jax.experimental import pallas as pl
from jax.experimental.pallas import tpu as pltpu

_LANE = 128


def _round_up(x, m):
    return (x + m - 1) // m * m


def _pick_tile_rows(h, w_pad, target_rows=512):
    """Largest divisor TH of h with TH * w_pad <= target_rows (at least 1)."""
    best = 1
    for th in range(1, h + 1):
        if h % th == 0 and th * w_pad <= target_rows:
            best = th
    return best


def _conv_block_kernel(x_ref, w_ref, b_ref, o_ref, *, wp, tile_m):
    # x_ref: ((TH+2)*Wp, 3*Cin) bf16 row slab: TH output rows + 1-row halo,
    #                            the 3 horizontal (kx) taps folded into K.
    # w_ref: (3, 3*Cin, 2*Cp)   bf16 BN-folded weights, axis0 = ky tap,
    #                            [branch1 | branch2] along the last dim.
    # b_ref: (1, 2*Cp)          f32  BN-folded biases.
    # o_ref: (TM, Cp)           output tile:  relu(y1) + y2.
    cp = o_ref.shape[-1]
    # Vertical (ky) taps = row-shifted slices of the slab; 3 accumulating
    # MXU matmuls, f32 accumulation.
    acc = jnp.dot(x_ref[0:tile_m, :], w_ref[0],
                  preferred_element_type=jnp.float32)
    acc += jnp.dot(x_ref[wp:wp + tile_m, :], w_ref[1],
                   preferred_element_type=jnp.float32)
    acc += jnp.dot(x_ref[2 * wp:2 * wp + tile_m, :], w_ref[2],
                   preferred_element_type=jnp.float32)
    acc += b_ref[...]
    y1 = acc[:, :cp]        # branch 1 (model):       ReLU
    y2 = acc[:, cp:]        # branch 2 (downSample)
    o_ref[...] = (jnp.maximum(y1, 0.0) + y2).astype(o_ref.dtype)


def _fold_bn(w_oihw, b, gamma, beta, mean, var, eps=1e-5):
    """Fold eval-mode BatchNorm into the conv weight/bias.

    Returns (w_hwio: (3, 3, Cin, Cout), b: (Cout,)).
    """
    scale = gamma / jnp.sqrt(var + eps)                      # (Cout,)
    w_scaled = w_oihw * scale[:, None, None, None]           # (Cout, Cin, 3, 3)
    b_folded = (b - mean) * scale + beta                     # (Cout,)
    return jnp.transpose(w_scaled, (2, 3, 1, 0)), b_folded   # (ky, kx, Cin, Cout)


def conv_block(x_nchw, params, *, tile_rows_target=512,
               compute_dtype=jnp.bfloat16, out_dtype=jnp.float32):
    """Pallas forward of the `Conv` module (diff=True), eval-mode BN."""
    w1, b1, g1, bt1, m1, v1, w2, b2, g2, bt2, m2, v2 = params
    n, cin, h, w = x_nchw.shape
    cout = w1.shape[0]
    cp = _round_up(cout, _LANE)
    k3 = 3 * cin

    # ---- BN fold + branch fusion (layout plumbing, off the hot path) ----
    w1f, b1f = _fold_bn(w1, b1, g1, bt1, m1, v1)             # (3,3,Cin,Cout)
    w2f, b2f = _fold_bn(w2, b2, g2, bt2, m2, v2)

    def _pad_c(wf):
        return jnp.pad(wf, ((0, 0), (0, 0), (0, 0), (0, cp - cout)))

    w_cat = jnp.concatenate([_pad_c(w1f), _pad_c(w2f)], axis=-1)   # (3,3,Cin,2Cp)
    w_cat = w_cat.reshape(3, k3, 2 * cp).astype(compute_dtype)     # axis1 = kx*Cin+cin
    b_cat = jnp.concatenate([jnp.pad(b1f, (0, cp - cout)),
                             jnp.pad(b2f, (0, cp - cout))])[None, :]
    b_cat = b_cat.astype(jnp.float32)                              # (1, 2*Cp)

    # ---- fused tap extraction: bf16 first, no (M, 9*Cin) matrix in HBM ----
    # Only the 3 horizontal (kx) taps are folded here (~3x bf16 slab); the 3
    # vertical (ky) taps come from a 1-row halo assembled inside the kernel.
    wp = _round_up(w, 8)                          # keep sublane slices aligned
    x_nhwc = jnp.transpose(x_nchw, (0, 2, 3, 1)).astype(compute_dtype)
    x_nhwc = jnp.pad(x_nhwc, ((0, 0), (0, 0), (1, wp - w + 1), (0, 0)))
    taps = jnp.concatenate([x_nhwc[:, :, kx:kx + wp, :] for kx in range(3)],
                           axis=-1)                                # (N,H,Wp,3Cin)
    taps = jnp.pad(taps, ((0, 0), (1, 1), (0, 0), (0, 0)))         # height halo

    th = _pick_tile_rows(h, wp, tile_rows_target)  # rows of output per tile
    ht = h // th
    tm = th * wp                                   # GEMM rows per tile (~512)
    slab_rows = (th + 2) * wp
    # Duplicate the 1-row halo per tile (2/TH overhead) so the input stays a
    # plain non-overlapping BlockSpec -> auto double-buffered pipelining.
    xslab = jnp.stack([taps[:, rt * th: rt * th + th + 2] for rt in range(ht)],
                      axis=1)                                      # (N,HT,TH+2,Wp,3Cin)
    xslab = xslab.reshape(n * ht * slab_rows, k3)

    kernel = functools.partial(_conv_block_kernel, wp=wp, tile_m=tm)
    out2d = pl.pallas_call(
        kernel,
        out_shape=jax.ShapeDtypeStruct((n * ht * tm, cp), out_dtype),
        grid_spec=pltpu.PrefetchScalarGridSpec(
            num_scalar_prefetch=0,
            grid=(n * ht,),
            in_specs=[
                pl.BlockSpec((slab_rows, k3), lambda i: (i, 0)),
                # Grid-invariant blocks: single-buffer (no dead VMEM on v7x).
                pl.BlockSpec((3, k3, 2 * cp), lambda i: (0, 0, 0),
                             pipeline_mode=pl.Buffered(1)),
                pl.BlockSpec((1, 2 * cp), lambda i: (0, 0),
                             pipeline_mode=pl.Buffered(1)),
            ],
            out_specs=pl.BlockSpec((tm, cp), lambda i: (i, 0)),
        ),
        compiler_params=pltpu.CompilerParams(
            dimension_semantics=("parallel",),    # row tiles shard across TCs
            vmem_limit_bytes=32 * 1024 * 1024,    # ample: per-tile VMEM < 1 MiB
        ),
    )(xslab, w_cat, b_cat)

    out = out2d[:, :cout].reshape(n, h, wp, cout)[:, :, :w, :]     # drop pads
    # TODO(synk): consumers that accept NHWC (and bf16) should take `out`
    # directly; the transpose below only matches the module's NCHW contract.
    return jnp.transpose(out, (0, 3, 1, 2)).astype(jnp.float32)


def _reference(x_nchw, params):
    """Pure-JAX reference (mirrors the PyTorch forward in eval mode)."""
    w1, b1, g1, bt1, m1, v1, w2, b2, g2, bt2, m2, v2 = params
    eps = 1e-5

    def conv_bn(x, wgt, b, g, bt, m, v):
        y = jax.lax.conv_general_dilated(
            x, wgt, window_strides=(1, 1), padding=((1, 1), (1, 1)),
            dimension_numbers=("NCHW", "OIHW", "NCHW"))
        y = y + b[None, :, None, None]
        return (y - m[None, :, None, None]) / jnp.sqrt(v + eps)[None, :, None, None] \
            * g[None, :, None, None] + bt[None, :, None, None]

    branch1 = jax.nn.relu(conv_bn(x_nchw, w1, b1, g1, bt1, m1, v1))
    branch2 = conv_bn(x_nchw, w2, b2, g2, bt2, m2, v2)
    return branch1 + branch2


if __name__ == "__main__":
    key = jax.random.PRNGKey(0)
    N, Cin, H, W = 2, 4, 16, 16
    Cout = 8

    keys = jax.random.split(key, 13)
    fan_in = Cin * 3 * 3
    std = (1.0 / fan_in) ** 0.5
    # Branch 1: Conv2d + BatchNorm2d (model)
    w1 = jax.random.normal(keys[0], (Cout, Cin, 3, 3), jnp.float32) * std
    b1 = jax.random.normal(keys[1], (Cout,), jnp.float32) * std
    g1 = 1.0 + 0.1 * jax.random.normal(keys[2], (Cout,), jnp.float32)
    bt1 = 0.1 * jax.random.normal(keys[3], (Cout,), jnp.float32)
    m1 = 0.1 * jax.random.normal(keys[4], (Cout,), jnp.float32)
    v1 = 0.5 + jnp.abs(jax.random.normal(keys[5], (Cout,), jnp.float32))
    # Branch 2: Conv2d + BatchNorm2d (downSample)
    w2 = jax.random.normal(keys[6], (Cout, Cin, 3, 3), jnp.float32) * std
    b2 = jax.random.normal(keys[7], (Cout,), jnp.float32) * std
    g2 = 1.0 + 0.1 * jax.random.normal(keys[8], (Cout,), jnp.float32)
    bt2 = 0.1 * jax.random.normal(keys[9], (Cout,), jnp.float32)
    m2 = 0.1 * jax.random.normal(keys[10], (Cout,), jnp.float32)
    v2 = 0.5 + jnp.abs(jax.random.normal(keys[11], (Cout,), jnp.float32))

    params = (w1, b1, g1, bt1, m1, v1, w2, b2, g2, bt2, m2, v2)
    x = jax.random.normal(keys[12], (N, Cin, H, W), jnp.float32)

    out = jax.block_until_ready(conv_block(x, params))
    ref = jax.block_until_ready(_reference(x, params))

    assert out.shape == (N, Cout, H, W), out.shape
    # bf16 MXU inputs with f32 accumulation -> relaxed tolerance vs f32 reference.
    max_err = float(jnp.max(jnp.abs(out - ref)))
    assert jnp.allclose(out, ref, atol=5e-2, rtol=5e-2), max_err
    print("KERNEL_OK")
</pallas_src>

<mosaic_0001>
module attributes {stable_mosaic.version = 11 : i64} {
  func.func @_conv_block_kernel(%arg0: i32, %arg1: memref<288x12xbf16, #tpu.memory_space<vmem>>, %arg2: memref<3x12x256xbf16, #tpu.memory_space<vmem>>, %arg3: memref<1x256xf32, #tpu.memory_space<vmem>>, %arg4: memref<256x128xf32, #tpu.memory_space<vmem>>) attributes {dimension_semantics = [#tpu.dimension_semantics<parallel>], iteration_bounds = array<i64: 2>, scalar_prefetch = 0 : i64, scratch_operands = 0 : i64, tpu.core_type = #tpu.core_type<tc>, window_params = [{transform_indices = @transform_0, window_bounds = array<i64: 288, 12>}, {pipeline_mode = #tpu.pipeline_mode<synchronous>, transform_indices = @transform_1, window_bounds = array<i64: 3, 12, 256>}, {pipeline_mode = #tpu.pipeline_mode<synchronous>, transform_indices = @transform_2, window_bounds = array<i64: 1, 256>}, {transform_indices = @transform_3, window_bounds = array<i64: 256, 128>}]} {
    %c0 = arith.constant 0 : index
    %c0_0 = arith.constant 0 : index
    %0 = vector.load %arg1[%c0, %c0_0] : memref<288x12xbf16, #tpu.memory_space<vmem>>, vector<256x12xbf16>
    %c0_1 = arith.constant 0 : index
    %c0_2 = arith.constant 0 : index
    %c0_3 = arith.constant 0 : index
    %1 = vector.load %arg2[%c0_1, %c0_2, %c0_3] : memref<3x12x256xbf16, #tpu.memory_space<vmem>>, vector<1x12x256xbf16>
    %2 = vector.shape_cast %1 : vector<1x12x256xbf16> to vector<12x256xbf16>
    %cst = arith.constant dense<0.000000e+00> : vector<256x256xf32>
    %3 = tpu.matmul %0, %2, %cst {dimension_numbers = #tpu.dot_dimension_numbers<[1], [0], [0], [1], [0, 0, 1, 1], [], []>} : vector<256x12xbf16>, vector<12x256xbf16>, vector<256x256xf32> -> vector<256x256xf32>
    %c16 = arith.constant 16 : index
    %c0_4 = arith.constant 0 : index
    %4 = vector.load %arg1[%c16, %c0_4] : memref<288x12xbf16, #tpu.memory_space<vmem>>, vector<256x12xbf16>
    %c1 = arith.constant 1 : index
    %c0_5 = arith.constant 0 : index
    %c0_6 = arith.constant 0 : index
    %5 = vector.load %arg2[%c1, %c0_5, %c0_6] : memref<3x12x256xbf16, #tpu.memory_space<vmem>>, vector<1x12x256xbf16>
    %6 = vector.shape_cast %5 : vector<1x12x256xbf16> to vector<12x256xbf16>
    %cst_7 = arith.constant dense<0.000000e+00> : vector<256x256xf32>
    %7 = tpu.matmul %4, %6, %cst_7 {dimension_numbers = #tpu.dot_dimension_numbers<[1], [0], [0], [1], [0, 0, 1, 1], [], []>} : vector<256x12xbf16>, vector<12x256xbf16>, vector<256x256xf32> -> vector<256x256xf32>
    %8 = arith.addf %3, %7 : vector<256x256xf32>
    %c32 = arith.constant 32 : index
    %c0_8 = arith.constant 0 : index
    %9 = vector.load %arg1[%c32, %c0_8] : memref<288x12xbf16, #tpu.memory_space<vmem>>, vector<256x12xbf16>
    %c2 = arith.constant 2 : index
    %c0_9 = arith.constant 0 : index
    %c0_10 = arith.constant 0 : index
    %10 = vector.load %arg2[%c2, %c0_9, %c0_10] : memref<3x12x256xbf16, #tpu.memory_space<vmem>>, vector<1x12x256xbf16>
    %11 = vector.shape_cast %10 : vector<1x12x256xbf16> to vector<12x256xbf16>
    %cst_11 = arith.constant dense<0.000000e+00> : vector<256x256xf32>
    %12 = tpu.matmul %9, %11, %cst_11 {dimension_numbers = #tpu.dot_dimension_numbers<[1], [0], [0], [1], [0, 0, 1, 1], [], []>} : vector<256x12xbf16>, vector<12x256xbf16>, vector<256x256xf32> -> vector<256x256xf32>
    %13 = arith.addf %8, %12 : vector<256x256xf32>
    %c0_12 = arith.constant 0 : index
    %c0_13 = arith.constant 0 : index
    %14 = vector.load %arg3[%c0_12, %c0_13] : memref<1x256xf32, #tpu.memory_space<vmem>>, vector<1x256xf32>
    %15 = vector.broadcast %14 : vector<1x256xf32> to vector<256x256xf32>
    %16 = arith.addf %13, %15 : vector<256x256xf32>
    %17 = vector.extract_strided_slice %16 {offsets = [0, 0], sizes = [256, 128], strides = [1, 1]} : vector<256x256xf32> to vector<256x128xf32>
    %18 = vector.extract_strided_slice %16 {offsets = [0, 128], sizes = [256, 128], strides = [1, 1]} : vector<256x256xf32> to vector<256x128xf32>
    %cst_14 = arith.constant 0.000000e+00 : f32
    %19 = vector.broadcast %cst_14 : f32 to vector<256x128xf32>
    %20 = arith.maximumf %17, %19 : vector<256x128xf32>
    %21 = arith.addf %20, %18 : vector<256x128xf32>
    %c0_15 = arith.constant 0 : index
    %c0_16 = arith.constant 0 : index
    %22 = vector.load %arg4[%c0_15, %c0_16] : memref<256x128xf32, #tpu.memory_space<vmem>>, vector<256x128xf32>
    tpu.vector_store %arg4[%c0_15, %c0_16], %21 {strides = array<i32>} : memref<256x128xf32, #tpu.memory_space<vmem>>, vector<256x128xf32>,
    return
  }
  func.func @transform_0(%arg0: i32) -> (i32, i32) {
    %c0_i32 = arith.constant 0 : i32
    %c0_i32_0 = arith.constant 0 : i32
    return %arg0, %c0_i32 : i32, i32
  }
  func.func @transform_1(%arg0: i32) -> (i32, i32, i32) {
    %c0_i32 = arith.constant 0 : i32
    %c0_i32_0 = arith.constant 0 : i32
    %c0_i32_1 = arith.constant 0 : i32
    %c0_i32_2 = arith.constant 0 : i32
    return %c0_i32, %c0_i32_0, %c0_i32_1 : i32, i32, i32
  }
  func.func @transform_2(%arg0: i32) -> (i32, i32) {
    %c0_i32 = arith.constant 0 : i32
    %c0_i32_0 = arith.constant 0 : i32
    %c0_i32_1 = arith.constant 0 : i32
    return %c0_i32, %c0_i32_0 : i32, i32
  }
  func.func @transform_3(%arg0: i32) -> (i32, i32) {
    %c0_i32 = arith.constant 0 : i32
    %c0_i32_0 = arith.constant 0 : i32
    return %arg0, %c0_i32 : i32, i32
  }
}

</mosaic_0001>

<llo_original>
// kernel: tpu_custom_call.1
$region0: #{tpu_custom_call.1}
  #allocation0 [shape = 'u32[]', space=smem, size = 0x4, offset = 0x4, fixed_abs, tag = 'smem constant byte address 0x4 - core index']
  #allocation1 [shape = 'u32[72,128]{1,0:T(1,128)}', space=vmem, size = 0x9000, scoped, tag = 'internal scratch']
  %s0 = inlined_call_operand.vmem [shape: bf16[576,12], index: 0, kind: input, shape index: {}]
  %s1 = inlined_call_operand.vmem [shape: bf16[3,12,256], index: 1, kind: input, shape index: {}]
  %s2 = inlined_call_operand.vmem [shape: f32[1,256], index: 2, kind: input, shape index: {}]
  %s3 = inlined_call_operand.hbm [shape: f32[512,128], index: 3, kind: output, shape index: {}]
  %s4 = sld [smem:[#allocation0]]
  $region45: #{tpu_custom_call.1} parent=0
    _
  %s6 = ssub.s32 1, %s4
  %s7 = scalar_select 0, %s6, %s4
  $region1: #{tpu_custom_call.1} parent=0
    #allocation2 [shape = 'u8[262144]{0}', space=vmem, size = 0x40000, scoped, tag = 'output window, operand 0']
    #allocation3 [shape = 's32[2]{0}', space=sflag, size = 0x8, scoped, tag = 'scoped memory for tpu_custom_call.1']
    %8 = vsyncpa [#allocation3], 0
    %s9 = scalar_lea.sflag [#allocation3], 1
    %10 = vsyncpa %s9, 0
    loop: start=0, step=1, limit=4
    $region2: #{tpu_custom_call.1} parent=1 // loop_pre_header
      _
    $region3: #{tpu_custom_call.1} parent=1 // loop_header
      %s12 = sphi 0, %s16
      %p13 = scmp.ge.s32.totalorder %s12, 4
      %s22 = sphi 0, %s24
      %s25 = sphi 0, %s22
      %s26 = sphi 0, %s25
      %s42 = sphi 0, %s26
      %s46 = sphi 0, %s46
      %s48 = sphi 0, %s46
      %s49 = sphi 0, %s48
      %s63 = sphi 0, %s49
      %s67 = sphi 0, %s67
      %s69 = sphi 0, %s67
      %s70 = sphi 0, %s69
      %s84 = sphi 0, %s70
      %s90 = sphi 0, %s92
      %s93 = sphi 0, %s90
      %s94 = sphi 0, %s93
      %s110 = sphi 0, %s94
    $region4: #{tpu_custom_call.1} parent=1 // loop_header_branch
      %15 = sbr.rel (%p13) target = $region8
    $region5: #{tpu_custom_call.1} parent=1 // loop_body
      %s17 = ssub.s32 %s12, 1
      %s18 = ssub.s32 %s12, 2
      %s19 = sadd.s32 %s12, 1
      %s20 = ssub.s32 %s12, %s19
      %p21 = scmp.eq.s32.totalorder %s20, 0
      %s23 = sadd.s32 %s22, 1
      %s24 = scalar_select %p21, %s22, %s23
      %p27 = pneg %p21
      %p28 = scmp.eq.s32.totalorder %s12, 1
      %p29 = por %p27, %p28
      %p30 = scmp.ne.s32.totalorder %s22, %s25
      %p31 = scmp.eq.s32.totalorder %s12, 0
      %p32 = por %p30, %p31
      %p33 = scmp.ne.s32.totalorder %s22, %s25
      %p34 = scmp.eq.s32.totalorder %s17, 1
      %p35 = por %p33, %p34
      %p36 = scmp.ne.s32.totalorder %s25, %s26
      %p37 = scmp.eq.s32.totalorder %s17, 0
      %p38 = por %p36, %p37
      %p39 = scmp.ne.s32.totalorder %s25, %s26
      %p40 = scmp.eq.s32.totalorder %s18, 1
      %p41 = por %p39, %p40
      %p43 = scmp.ne.s32.totalorder %s26, %s42
      %p44 = scmp.eq.s32.totalorder %s18, 0
      %p45 = por %p43, %p44
      %s47 = sadd.s32 %s46, 1
      %p50 = scmp.eq.s32.totalorder %s12, 1
      %p51 = scmp.ne.s32.totalorder %s46, %s48
      %p52 = scmp.eq.s32.totalorder %s12, 0
      %p53 = por %p51, %p52
      %p54 = scmp.ne.s32.totalorder %s46, %s48
      %p55 = scmp.eq.s32.totalorder %s17, 1
      %p56 = por %p54, %p55
      %p57 = scmp.ne.s32.totalorder %s48, %s49
      %p58 = scmp.eq.s32.totalorder %s17, 0
      %p59 = por %p57, %p58
      %p60 = scmp.ne.s32.totalorder %s48, %s49
      %p61 = scmp.eq.s32.totalorder %s18, 1
      %p62 = por %p60, %p61
      %p64 = scmp.ne.s32.totalorder %s49, %s63
      %p65 = scmp.eq.s32.totalorder %s18, 0
      %p66 = por %p64, %p65
      %s68 = sadd.s32 %s67, 1
      %p71 = scmp.eq.s32.totalorder %s12, 1
      %p72 = scmp.ne.s32.totalorder %s67, %s69
      %p73 = scmp.eq.s32.totalorder %s12, 0
      %p74 = por %p72, %p73
      %p75 = scmp.ne.s32.totalorder %s67, %s69
      %p76 = scmp.eq.s32.totalorder %s17, 1
      %p77 = por %p75, %p76
      %p78 = scmp.ne.s32.totalorder %s69, %s70
      %p79 = scmp.eq.s32.totalorder %s17, 0
      %p80 = por %p78, %p79
      %p81 = scmp.ne.s32.totalorder %s69, %s70
      %p82 = scmp.eq.s32.totalorder %s18, 1
      %p83 = por %p81, %p82
      %p85 = scmp.ne.s32.totalorder %s70, %s84
      %p86 = scmp.eq.s32.totalorder %s18, 0
      %p87 = por %p85, %p86
      %s88 = ssub.s32 %s12, %s19
      %p89 = scmp.eq.s32.totalorder %s88, 0
      %s91 = sadd.s32 %s90, 1
      %s92 = scalar_select %p89, %s90, %s91
      %p95 = pneg %p89
      %p96 = scmp.eq.s32.totalorder %s12, 1
      %p97 = por %p95, %p96
      %p98 = scmp.ne.s32.totalorder %s90, %s93
      %p99 = scmp.eq.s32.totalorder %s12, 0
      %p100 = por %p98, %p99
      %p101 = scmp.ne.s32.totalorder %s90, %s93
      %p102 = scmp.eq.s32.totalorder %s17, 1
      %p103 = por %p101, %p102
      %p104 = scmp.ne.s32.totalorder %s93, %s94
      %p105 = scmp.eq.s32.totalorder %s17, 0
      %p106 = por %p104, %p105
      %p107 = scmp.ne.s32.totalorder %s93, %s94
      %p108 = scmp.eq.s32.totalorder %s18, 1
      %p109 = por %p107, %p108
      %p111 = scmp.ne.s32.totalorder %s94, %s110
      %p112 = scmp.eq.s32.totalorder %s18, 0
      %p113 = por %p111, %p112
      %p114 = scmp.le.s32.totalorder 1, %s12
      %p115 = scmp.lt.s32.totalorder %s12, 3
      %p116 = pnand %p114, %p115
      %p117 = pneg %p116
      // Predicated region
      $region9: #{tpu_custom_call.1} parent=5 // pred_check
        _
      $region10: #{tpu_custom_call.1} parent=5 // pred_check_branch
        %119 = sbr.rel (%p116) target = $region12
      $region11: #{tpu_custom_call.1} parent=5 // pred_region
        %s120 = ssub.s32 %s12, 1
        // Predicated region
        $region13: #{tpu_custom_call.1} parent=11 // pred_check
          %p121 = pneg %p59
        $region14: #{tpu_custom_call.1} parent=11 // pred_check_branch
          %123 = sbr.rel (%p121) target = $region16
        $region15: #{tpu_custom_call.1} parent=11 // pred_region
          _
        $region16: #{tpu_custom_call.1} parent=11 // pred_fallthru
          _
        // Predicated region
        $region17: #{tpu_custom_call.1} parent=11 // pred_check
          %p124 = pneg %p80
        $region18: #{tpu_custom_call.1} parent=11 // pred_check_branch
          %126 = sbr.rel (%p124) target = $region20
        $region19: #{tpu_custom_call.1} parent=11 // pred_region
          _
        $region20: #{tpu_custom_call.1} parent=11 // pred_fallthru
          _
      $region12: #{tpu_custom_call.1} parent=5 // pred_fallthru
        _
      %p127 = scmp.lt.s32.totalorder %s12, 2
      // Predicated region
      $region21: #{tpu_custom_call.1} parent=5 // pred_check
        %p128 = pneg %p127
      $region22: #{tpu_custom_call.1} parent=5 // pred_check_branch
        %130 = sbr.rel (%p128) target = $region24
      $region23: #{tpu_custom_call.1} parent=5 // pred_region
        // Predicated region
        $region25: #{tpu_custom_call.1} parent=23 // pred_check
          %p131 = pneg %p32
        $region26: #{tpu_custom_call.1} parent=23 // pred_check_branch
          %133 = sbr.rel (%p131) target = $region28
        $region27: #{tpu_custom_call.1} parent=23 // pred_region
          %s134 = smul.u32 36, %s12
          %p135 = scmp.lt.s32.totalorder %s134, 71
          %s136 = scalar_select %p135, %s134, 71
          %s137 = smul.addr %s136, 4
          %s138 = scalar_lea.vmem %s0, %s137
          %s139 = smul.u32 36, %s12
        $region28: #{tpu_custom_call.1} parent=23 // pred_fallthru
          _
      $region24: #{tpu_custom_call.1} parent=5 // pred_fallthru
        _
      %p140 = scmp.le.s32.totalorder 1, %s12
      %p141 = scmp.lt.s32.totalorder %s12, 3
      %p142 = pnand %p140, %p141
      %p143 = pneg %p142
      // Predicated region
      $region29: #{tpu_custom_call.1} parent=5 // pred_check
        _
      $region30: #{tpu_custom_call.1} parent=5 // pred_check_branch
        %145 = sbr.rel (%p142) target = $region32
      $region31: #{tpu_custom_call.1} parent=5 // pred_region
        %s146 = ssub.s32 %s12, 1
        %s147 = smul.u32 36, %s17
        %p148 = scmp.lt.s32.totalorder %s147, 71
        %s149 = scalar_select %p148, %s147, 71
        %s150 = smul.addr %s149, 4
        %s151 = scalar_lea.vmem %s0, %s150
        %p152 = pneg %p38
        %p153 = pneg %p35
        %p154 = pneg %p59
        %p155 = pneg %p56
        %p156 = pneg %p80
        %p157 = pneg %p77
        %p158 = pneg %p106
        %p159 = pneg %p103
        %s160 = sand.u32 %s93, 1
        %s161 = scalar_lea.sflag [#allocation3], %s160
        %s162 = sand.u32 %s93, 1
        %s163 = smul.addr %s162, 256
        %s164 = scalar_lea.vmem [#allocation2], %s163
        %s165 = smul.u32 36, %s17
        %p166 = scmp.lt.s32.totalorder %s165, 71
        %s167 = scalar_select %p166, %s165, 71
        %s168 = smul.addr %s167, 4
        %s169 = scalar_lea.vmem %s0, %s168
        %s170 = smul.u32 36, %s17
        %s171 = smul.u32 32, %s17
        %v173 = vld [vmem:[%s169] sm:$0xf]
        %v174 = vld [vmem:[%s169 + $0x4] sm:$0xf]
        %v175 = vld [vmem:[%s169 + $0x8] sm:$0xf]
        %v176 = vld [vmem:[%s169 + $0xc] sm:$0xf]
        %v177 = vld [vmem:[%s169 + $0x10] sm:$0xf]
        %v178 = vld [vmem:[%s169 + $0x14] sm:$0xf]
        %v179 = vld [vmem:[%s169 + $0x18] sm:$0xf]
        %v180 = vld [vmem:[%s169 + $0x1c] sm:$0xf]
        %v181 = vld [vmem:[%s169 + $0x20] sm:$0xf]
        %v182 = vld [vmem:[%s169 + $0x24] sm:$0xf]
        %v183 = vld [vmem:[%s169 + $0x28] sm:$0xf]
        %v184 = vld [vmem:[%s169 + $0x2c] sm:$0xf]
        %v185 = vld [vmem:[%s169 + $0x30] sm:$0xf]
        %v186 = vld [vmem:[%s169 + $0x34] sm:$0xf]
        %v187 = vld [vmem:[%s169 + $0x38] sm:$0xf]
        %v188 = vld [vmem:[%s169 + $0x3c] sm:$0xf]
        %v189 = vld [vmem:[%s169 + $0x40] sm:$0xf]
        %v190 = vld [vmem:[%s169 + $0x44] sm:$0xf]
        %v191 = vld [vmem:[%s169 + $0x48] sm:$0xf]
        %v192 = vld [vmem:[%s169 + $0x4c] sm:$0xf]
        %v193 = vld [vmem:[%s169 + $0x50] sm:$0xf]
        %v194 = vld [vmem:[%s169 + $0x54] sm:$0xf]
        %v195 = vld [vmem:[%s169 + $0x58] sm:$0xf]
        %v196 = vld [vmem:[%s169 + $0x5c] sm:$0xf]
        %v197 = vld [vmem:[%s169 + $0x60] sm:$0xf]
        %v198 = vld [vmem:[%s169 + $0x64] sm:$0xf]
        %v199 = vld [vmem:[%s169 + $0x68] sm:$0xf]
        %v200 = vld [vmem:[%s169 + $0x6c] sm:$0xf]
        %v201 = vld [vmem:[%s169 + $0x70] sm:$0xf]
        %v202 = vld [vmem:[%s169 + $0x74] sm:$0xf]
        %v203 = vld [vmem:[%s169 + $0x78] sm:$0xf]
        %v204 = vld [vmem:[%s169 + $0x7c] sm:$0xf]
        %v205 = vld [vmem:[%s1] sm:$0xff]
        %v206 = vld [vmem:[%s1 + $0x8] sm:$0x33]
        %v207 = vld [vmem:[%s169 + $0x80] sm:$0xf]
        %v208 = vld [vmem:[%s169 + $0x84] sm:$0xf]
        %s209 = scalar_lea.vmem %s1, 16
        %v210 = vld [vmem:[%s209] sm:$0xff]
        %v211 = vld [vmem:[%s209 + $0x8] sm:$0x33]
        %v244 = vunpack.c.l.b16 %v175
        %v245 = vunpack.c.l.b16 %v176
        %v246 = vunpack.c.l.b16 %v177
        %v247 = vunpack.c.l.b16 %v178
        %v248 = vunpack.c.l.b16 %v179
        %v249 = vunpack.c.l.b16 %v180
        %v250 = vunpack.c.l.b16 %v181
        %v251 = vunpack.c.l.b16 %v182
        %v252 = vunpack.c.l.b16 %v183
        %v253 = vunpack.c.l.b16 %v184
        %v254 = vunpack.c.l.b16 %v185
        %v255 = vunpack.c.l.b16 %v186
        %v256 = vunpack.c.l.b16 %v187
        %v257 = vunpack.c.l.b16 %v188
        %v258 = vunpack.c.l.b16 %v189
        %v259 = vunpack.c.l.b16 %v190
        %v260 = vunpack.c.l.b16 %v191
        %v261 = vunpack.c.l.b16 %v192
        %v262 = vunpack.c.l.b16 %v193
        %v263 = vunpack.c.l.b16 %v194
        %v264 = vunpack.c.l.b16 %v195
        %v265 = vunpack.c.l.b16 %v196
        %v266 = vunpack.c.l.b16 %v197
        %v267 = vunpack.c.l.b16 %v198
        %v268 = vunpack.c.l.b16 %v199
        %v269 = vunpack.c.l.b16 %v200
        %v270 = vunpack.c.l.b16 %v201
        %v271 = vunpack.c.l.b16 %v202
        %v272 = vunpack.c.l.b16 %v203
        %v273 = vunpack.c.l.b16 %v204
        %v274 = vunpack.c.l.b16 %v207
        %v275 = vunpack.c.l.b16 %v208
        %v276 = vpack.c.b16 %v245, %v244
        %v277 = vpack.c.b16 %v247, %v246
        %v278 = vpack.c.b16 %v249, %v248
        %v279 = vpack.c.b16 %v251, %v250
        %v280 = vpack.c.b16 %v253, %v252
        %v281 = vpack.c.b16 %v255, %v254
        %v282 = vpack.c.b16 %v257, %v256
        %v283 = vpack.c.b16 %v259, %v258
        %v284 = vpack.c.b16 %v261, %v260
        %v285 = vpack.c.b16 %v263, %v262
        %v286 = vpack.c.b16 %v265, %v264
        %v287 = vpack.c.b16 %v267, %v266
        %v288 = vpack.c.b16 %v269, %v268
        %v289 = vpack.c.b16 %v271, %v270
        %v290 = vpack.c.b16 %v273, %v272
        %v291 = vpack.c.b16 %v275, %v274
        %v294 = vunpack.c.l.b16 %v210
        %v295 = vunpack.c.h.b16 %v210
        %v296 = vunpack.c.l.b16 %v211
        %v297 = vunpack.c.h.b16 %v211
        %v298 = vpack.c.b16 %v296, %v294
        %v299 = vpack.c.b16 %v297, %v295
        %vm300 = vcmask 97280
        %v302 = vsel %vm300, %v276, 0
        %v305 = vsel %vm300, %v277, 0
        %v308 = vsel %vm300, %v278, 0
        %v311 = vsel %vm300, %v279, 0
        %v314 = vsel %vm300, %v280, 0
        %v317 = vsel %vm300, %v281, 0
        %v320 = vsel %vm300, %v282, 0
        %v323 = vsel %vm300, %v283, 0
        %v326 = vsel %vm300, %v284, 0
        %v329 = vsel %vm300, %v285, 0
        %v332 = vsel %vm300, %v286, 0
        %v335 = vsel %vm300, %v287, 0
        %v338 = vsel %vm300, %v288, 0
        %v341 = vsel %vm300, %v289, 0
        %v344 = vsel %vm300, %v290, 0
        %v347 = vsel %vm300, %v291, 0
        %vm349 = vcmask 1045504
        %v351 = vsel %vm349, %v298, 0
        %v354 = vsel %vm349, %v299, 0
        %356 = vmatpush.bf16.msra.mxu0 0
        %357 = vmatpush.bf16.msra.mxu0 0
        %358 = vmatpush.bf16.msra.mxu0 0
        %359 = vmatpush.bf16.msra.mxu0 0
        %360 = vmatpush.bf16.msra.mxu0 0
        %361 = vmatpush.bf16.msra.mxu0 0
        %362 = vmatpush.bf16.msra.mxu0 0
        %363 = vmatpush.bf16.msra.mxu0 %v351
        %364 = vmatmul.bf16.gmra.mxu0 %v302
        %v365 = vpop.f32.mrf.mxu0
        %v366 = vadd.f32 0.0, %v365
        %v367 = vpop.f32.mrf.mxu0
        %v368 = vadd.f32 0.0, %v367
        %369 = vmatmul.bf16.gmra.mxu0 %v305
        %v370 = vpop.f32.mrf.mxu0
        %v371 = vadd.f32 0.0, %v370
        %v372 = vpop.f32.mrf.mxu0
        %v373 = vadd.f32 0.0, %v372
        %374 = vmatmul.bf16.gmra.mxu0 %v308
        %v375 = vpop.f32.mrf.mxu0
        %v376 = vadd.f32 0.0, %v375
        %v377 = vpop.f32.mrf.mxu0
        %v378 = vadd.f32 0.0, %v377
        %379 = vmatmul.bf16.gmra.mxu0 %v311
        %v380 = vpop.f32.mrf.mxu0
        %v381 = vadd.f32 0.0, %v380
        %v382 = vpop.f32.mrf.mxu0
        %v383 = vadd.f32 0.0, %v382
        %384 = vmatmul.bf16.gmra.mxu0 %v314
        %v385 = vpop.f32.mrf.mxu0
        %v386 = vadd.f32 0.0, %v385
        %v387 = vpop.f32.mrf.mxu0
        %v388 = vadd.f32 0.0, %v387
        %389 = vmatmul.bf16.gmra.mxu0 %v317
        %v390 = vpop.f32.mrf.mxu0
        %v391 = vadd.f32 0.0, %v390
        %v392 = vpop.f32.mrf.mxu0
        %v393 = vadd.f32 0.0, %v392
        %394 = vmatmul.bf16.gmra.mxu0 %v320
        %v395 = vpop.f32.mrf.mxu0
        %v396 = vadd.f32 0.0, %v395
        %v397 = vpop.f32.mrf.mxu0
        %v398 = vadd.f32 0.0, %v397
        %399 = vmatmul.bf16.gmra.mxu0 %v323
        %v400 = vpop.f32.mrf.mxu0
        %v401 = vadd.f32 0.0, %v400
        %v402 = vpop.f32.mrf.mxu0
        %v403 = vadd.f32 0.0, %v402
        %404 = vmatmul.bf16.gmra.mxu0 %v326
        %v405 = vpop.f32.mrf.mxu0
        %v406 = vadd.f32 0.0, %v405
        %v407 = vpop.f32.mrf.mxu0
        %v408 = vadd.f32 0.0, %v407
        %409 = vmatmul.bf16.gmra.mxu0 %v329
        %v410 = vpop.f32.mrf.mxu0
        %v411 = vadd.f32 0.0, %v410
        %v412 = vpop.f32.mrf.mxu0
        %v413 = vadd.f32 0.0, %v412
        %414 = vmatmul.bf16.gmra.mxu0 %v332
        %v415 = vpop.f32.mrf.mxu0
        %v416 = vadd.f32 0.0, %v415
        %v417 = vpop.f32.mrf.mxu0
        %v418 = vadd.f32 0.0, %v417
        %419 = vmatmul.bf16.gmra.mxu0 %v335
        %v420 = vpop.f32.mrf.mxu0
        %v421 = vadd.f32 0.0, %v420
        %v422 = vpop.f32.mrf.mxu0
        %v423 = vadd.f32 0.0, %v422
        %424 = vmatmul.bf16.gmra.mxu0 %v338
        %v425 = vpop.f32.mrf.mxu0
        %v426 = vadd.f32 0.0, %v425
        %v427 = vpop.f32.mrf.mxu0
        %v428 = vadd.f32 0.0, %v427
        %429 = vmatmul.bf16.gmra.mxu0 %v341
        %v430 = vpop.f32.mrf.mxu0
        %v431 = vadd.f32 0.0, %v430
        %v432 = vpop.f32.mrf.mxu0
        %v433 = vadd.f32 0.0, %v432
        %434 = vmatmul.bf16.gmra.mxu0 %v344
        %v435 = vpop.f32.mrf.mxu0
        %v436 = vadd.f32 0.0, %v435
        %v437 = vpop.f32.mrf.mxu0
        %v438 = vadd.f32 0.0, %v437
        %439 = vmatmul.bf16.gmra.mxu0 %v347
        %v440 = vpop.f32.mrf.mxu0
        %v441 = vadd.f32 0.0, %v440
        %v442 = vpop.f32.mrf.mxu0
        %v443 = vadd.f32 0.0, %v442
        %444 = vdwg.mxu0
        %445 = vmatpush.bf16.msra.mxu0 0
        %446 = vmatpush.bf16.msra.mxu0 0
        %447 = vmatpush.bf16.msra.mxu0 0
        %448 = vmatpush.bf16.msra.mxu0 0
        %449 = vmatpush.bf16.msra.mxu0 0
        %450 = vmatpush.bf16.msra.mxu0 0
        %451 = vmatpush.bf16.msra.mxu0 0
        %452 = vmatpush.bf16.msra.mxu0 %v354
        %453 = vmatmul.bf16.gmra.mxu0 %v302
        %v454 = vpop.f32.mrf.mxu0
        %v455 = vadd.f32 0.0, %v454
        %v456 = vpop.f32.mrf.mxu0
        %v457 = vadd.f32 0.0, %v456
        %458 = vmatmul.bf16.gmra.mxu0 %v305
        %v459 = vpop.f32.mrf.mxu0
        %v460 = vadd.f32 0.0, %v459
        %v461 = vpop.f32.mrf.mxu0
        %v462 = vadd.f32 0.0, %v461
        %463 = vmatmul.bf16.gmra.mxu0 %v308
        %v464 = vpop.f32.mrf.mxu0
        %v465 = vadd.f32 0.0, %v464
        %v466 = vpop.f32.mrf.mxu0
        %v467 = vadd.f32 0.0, %v466
        %468 = vmatmul.bf16.gmra.mxu0 %v311
        %v469 = vpop.f32.mrf.mxu0
        %v470 = vadd.f32 0.0, %v469
        %v471 = vpop.f32.mrf.mxu0
        %v472 = vadd.f32 0.0, %v471
        %473 = vmatmul.bf16.gmra.mxu0 %v314
        %v474 = vpop.f32.mrf.mxu0
        %v475 = vadd.f32 0.0, %v474
        %v476 = vpop.f32.mrf.mxu0
        %v477 = vadd.f32 0.0, %v476
        %478 = vmatmul.bf16.gmra.mxu0 %v317
        %v479 = vpop.f32.mrf.mxu0
        %v480 = vadd.f32 0.0, %v479
        %v481 = vpop.f32.mrf.mxu0
        %v482 = vadd.f32 0.0, %v481
        %483 = vmatmul.bf16.gmra.mxu0 %v320
        %v484 = vpop.f32.mrf.mxu0
        %v485 = vadd.f32 0.0, %v484
        %v486 = vpop.f32.mrf.mxu0
        %v487 = vadd.f32 0.0, %v486
        %488 = vmatmul.bf16.gmra.mxu0 %v323
        %v489 = vpop.f32.mrf.mxu0
        %v490 = vadd.f32 0.0, %v489
        %v491 = vpop.f32.mrf.mxu0
        %v492 = vadd.f32 0.0, %v491
        %493 = vmatmul.bf16.gmra.mxu0 %v326
        %v494 = vpop.f32.mrf.mxu0
        %v495 = vadd.f32 0.0, %v494
        %v496 = vpop.f32.mrf.mxu0
        %v497 = vadd.f32 0.0, %v496
        %498 = vmatmul.bf16.gmra.mxu0 %v329
        %v499 = vpop.f32.mrf.mxu0
        %v500 = vadd.f32 0.0, %v499
        %v501 = vpop.f32.mrf.mxu0
        %v502 = vadd.f32 0.0, %v501
        %503 = vmatmul.bf16.gmra.mxu0 %v332
        %v504 = vpop.f32.mrf.mxu0
        %v505 = vadd.f32 0.0, %v504
        %v506 = vpop.f32.mrf.mxu0
        %v507 = vadd.f32 0.0, %v506
        %508 = vmatmul.bf16.gmra.mxu0 %v335
        %v509 = vpop.f32.mrf.mxu0
        %v510 = vadd.f32 0.0, %v509
        %v511 = vpop.f32.mrf.mxu0
        %v512 = vadd.f32 0.0, %v511
        %513 = vmatmul.bf16.gmra.mxu0 %v338
        %v514 = vpop.f32.mrf.mxu0
        %v515 = vadd.f32 0.0, %v514
        %v516 = vpop.f32.mrf.mxu0
        %v517 = vadd.f32 0.0, %v516
        %518 = vmatmul.bf16.gmra.mxu0 %v341
        %v519 = vpop.f32.mrf.mxu0
        %v520 = vadd.f32 0.0, %v519
        %v521 = vpop.f32.mrf.mxu0
        %v522 = vadd.f32 0.0, %v521
        %523 = vmatmul.bf16.gmra.mxu0 %v344
        %v524 = vpop.f32.mrf.mxu0
        %v525 = vadd.f32 0.0, %v524
        %v526 = vpop.f32.mrf.mxu0
        %v527 = vadd.f32 0.0, %v526
        %528 = vmatmul.bf16.gmra.mxu0 %v347
        %v529 = vpop.f32.mrf.mxu0
        %v530 = vadd.f32 0.0, %v529
        %v531 = vpop.f32.mrf.mxu0
        %v532 = vadd.f32 0.0, %v531
        %533 = vdwg.mxu0
        %v536 = vunpack.c.l.b16 %v173
        %v537 = vunpack.c.l.b16 %v174
        %v538 = vpack.c.b16 %v537, %v536
        %v541 = vunpack.c.l.b16 %v205
        %v542 = vunpack.c.h.b16 %v205
        %v543 = vunpack.c.l.b16 %v206
        %v544 = vunpack.c.h.b16 %v206
        %v545 = vpack.c.b16 %v543, %v541
        %v546 = vpack.c.b16 %v544, %v542
        %v548 = vsel %vm300, %v538, 0
        %v551 = vsel %vm349, %v545, 0
        %v554 = vsel %vm349, %v546, 0
        %556 = vmatpush.bf16.msra.mxu0 0
        %557 = vmatpush.bf16.msra.mxu0 0
        %558 = vmatpush.bf16.msra.mxu0 0
        %559 = vmatpush.bf16.msra.mxu0 0
        %560 = vmatpush.bf16.msra.mxu0 0
        %561 = vmatpush.bf16.msra.mxu0 0
        %562 = vmatpush.bf16.msra.mxu0 0
        %563 = vmatpush.bf16.msra.mxu0 %v551
        %564 = vmatmul.bf16.gmra.mxu0 %v548
        %v565 = vpop.f32.mrf.mxu0
        %v566 = vadd.f32 %v366, %v565
        %v567 = vpop.f32.mrf.mxu0
        %v568 = vadd.f32 %v368, %v567
        %569 = vmatmul.bf16.gmra.mxu0 %v302
        %v570 = vpop.f32.mrf.mxu0
        %v571 = vadd.f32 %v371, %v570
        %v572 = vpop.f32.mrf.mxu0
        %v573 = vadd.f32 %v373, %v572
        %574 = vmatmul.bf16.gmra.mxu0 %v305
        %v575 = vpop.f32.mrf.mxu0
        %v576 = vadd.f32 %v376, %v575
        %v577 = vpop.f32.mrf.mxu0
        %v578 = vadd.f32 %v378, %v577
        %579 = vmatmul.bf16.gmra.mxu0 %v308
        %v580 = vpop.f32.mrf.mxu0
        %v581 = vadd.f32 %v381, %v580
        %v582 = vpop.f32.mrf.mxu0
        %v583 = vadd.f32 %v383, %v582
        %584 = vmatmul.bf16.gmra.mxu0 %v311
        %v585 = vpop.f32.mrf.mxu0
        %v586 = vadd.f32 %v386, %v585
        %v587 = vpop.f32.mrf.mxu0
        %v588 = vadd.f32 %v388, %v587
        %589 = vmatmul.bf16.gmra.mxu0 %v314
        %v590 = vpop.f32.mrf.mxu0
        %v591 = vadd.f32 %v391, %v590
        %v592 = vpop.f32.mrf.mxu0
        %v593 = vadd.f32 %v393, %v592
        %594 = vmatmul.bf16.gmra.mxu0 %v317
        %v595 = vpop.f32.mrf.mxu0
        %v596 = vadd.f32 %v396, %v595
        %v597 = vpop.f32.mrf.mxu0
        %v598 = vadd.f32 %v398, %v597
        %599 = vmatmul.bf16.gmra.mxu0 %v320
        %v600 = vpop.f32.mrf.mxu0
        %v601 = vadd.f32 %v401, %v600
        %v602 = vpop.f32.mrf.mxu0
        %v603 = vadd.f32 %v403, %v602
        %604 = vmatmul.bf16.gmra.mxu0 %v323
        %v605 = vpop.f32.mrf.mxu0
        %v606 = vadd.f32 %v406, %v605
        %v607 = vpop.f32.mrf.mxu0
        %v608 = vadd.f32 %v408, %v607
        %609 = vmatmul.bf16.gmra.mxu0 %v326
        %v610 = vpop.f32.mrf.mxu0
        %v611 = vadd.f32 %v411, %v610
        %v612 = vpop.f32.mrf.mxu0
        %v613 = vadd.f32 %v413, %v612
        %614 = vmatmul.bf16.gmra.mxu0 %v329
        %v615 = vpop.f32.mrf.mxu0
        %v616 = vadd.f32 %v416, %v615
        %v617 = vpop.f32.mrf.mxu0
        %v618 = vadd.f32 %v418, %v617
        %619 = vmatmul.bf16.gmra.mxu0 %v332
        %v620 = vpop.f32.mrf.mxu0
        %v621 = vadd.f32 %v421, %v620
        %v622 = vpop.f32.mrf.mxu0
        %v623 = vadd.f32 %v423, %v622
        %624 = vmatmul.bf16.gmra.mxu0 %v335
        %v625 = vpop.f32.mrf.mxu0
        %v626 = vadd.f32 %v426, %v625
        %v627 = vpop.f32.mrf.mxu0
        %v628 = vadd.f32 %v428, %v627
        %629 = vmatmul.bf16.gmra.mxu0 %v338
        %v630 = vpop.f32.mrf.mxu0
        %v631 = vadd.f32 %v431, %v630
        %v632 = vpop.f32.mrf.mxu0
        %v633 = vadd.f32 %v433, %v632
        %634 = vmatmul.bf16.gmra.mxu0 %v341
        %v635 = vpop.f32.mrf.mxu0
        %v636 = vadd.f32 %v436, %v635
        %v637 = vpop.f32.mrf.mxu0
        %v638 = vadd.f32 %v438, %v637
        %639 = vmatmul.bf16.gmra.mxu0 %v344
        %v640 = vpop.f32.mrf.mxu0
        %v641 = vadd.f32 %v441, %v640
        %v642 = vpop.f32.mrf.mxu0
        %v643 = vadd.f32 %v443, %v642
        %644 = vdwg.mxu0
        %645 = vmatpush.bf16.msra.mxu0 0
        %646 = vmatpush.bf16.msra.mxu0 0
        %647 = vmatpush.bf16.msra.mxu0 0
        %648 = vmatpush.bf16.msra.mxu0 0
        %649 = vmatpush.bf16.msra.mxu0 0
        %650 = vmatpush.bf16.msra.mxu0 0
        %651 = vmatpush.bf16.msra.mxu0 0
        %652 = vmatpush.bf16.msra.mxu0 %v554
        %653 = vmatmul.bf16.gmra.mxu0 %v548
        %v654 = vpop.f32.mrf.mxu0
        %v655 = vadd.f32 %v455, %v654
        %v656 = vpop.f32.mrf.mxu0
        %v657 = vadd.f32 %v457, %v656
        %658 = vmatmul.bf16.gmra.mxu0 %v302
        %v659 = vpop.f32.mrf.mxu0
        %v660 = vadd.f32 %v460, %v659
        %v661 = vpop.f32.mrf.mxu0
        %v662 = vadd.f32 %v462, %v661
        %663 = vmatmul.bf16.gmra.mxu0 %v305
        %v664 = vpop.f32.mrf.mxu0
        %v665 = vadd.f32 %v465, %v664
        %v666 = vpop.f32.mrf.mxu0
        %v667 = vadd.f32 %v467, %v666
        %668 = vmatmul.bf16.gmra.mxu0 %v308
        %v669 = vpop.f32.mrf.mxu0
        %v670 = vadd.f32 %v470, %v669
        %v671 = vpop.f32.mrf.mxu0
        %v672 = vadd.f32 %v472, %v671
        %673 = vmatmul.bf16.gmra.mxu0 %v311
        %v674 = vpop.f32.mrf.mxu0
        %v675 = vadd.f32 %v475, %v674
        %v676 = vpop.f32.mrf.mxu0
        %v677 = vadd.f32 %v477, %v676
        %678 = vmatmul.bf16.gmra.mxu0 %v314
        %v679 = vpop.f32.mrf.mxu0
        %v680 = vadd.f32 %v480, %v679
        %v681 = vpop.f32.mrf.mxu0
        %v682 = vadd.f32 %v482, %v681
        %683 = vmatmul.bf16.gmra.mxu0 %v317
        %v684 = vpop.f32.mrf.mxu0
        %v685 = vadd.f32 %v485, %v684
        %v686 = vpop.f32.mrf.mxu0
        %v687 = vadd.f32 %v487, %v686
        %688 = vmatmul.bf16.gmra.mxu0 %v320
        %v689 = vpop.f32.mrf.mxu0
        %v690 = vadd.f32 %v490, %v689
        %v691 = vpop.f32.mrf.mxu0
        %v692 = vadd.f32 %v492, %v691
        %693 = vmatmul.bf16.gmra.mxu0 %v323
        %v694 = vpop.f32.mrf.mxu0
        %v695 = vadd.f32 %v495, %v694
        %v696 = vpop.f32.mrf.mxu0
        %v697 = vadd.f32 %v497, %v696
        %698 = vmatmul.bf16.gmra.mxu0 %v326
        %v699 = vpop.f32.mrf.mxu0
        %v700 = vadd.f32 %v500, %v699
        %v701 = vpop.f32.mrf.mxu0
        %v702 = vadd.f32 %v502, %v701
        %703 = vmatmul.bf16.gmra.mxu0 %v329
        %v704 = vpop.f32.mrf.mxu0
        %v705 = vadd.f32 %v505, %v704
        %v706 = vpop.f32.mrf.mxu0
        %v707 = vadd.f32 %v507, %v706
        %708 = vmatmul.bf16.gmra.mxu0 %v332
        %v709 = vpop.f32.mrf.mxu0
        %v710 = vadd.f32 %v510, %v709
        %v711 = vpop.f32.mrf.mxu0
        %v712 = vadd.f32 %v512, %v711
        %713 = vmatmul.bf16.gmra.mxu0 %v335
        %v714 = vpop.f32.mrf.mxu0
        %v715 = vadd.f32 %v515, %v714
        %v716 = vpop.f32.mrf.mxu0
        %v717 = vadd.f32 %v517, %v716
        %718 = vmatmul.bf16.gmra.mxu0 %v338
        %v719 = vpop.f32.mrf.mxu0
        %v720 = vadd.f32 %v520, %v719
        %v721 = vpop.f32.mrf.mxu0
        %v722 = vadd.f32 %v522, %v721
        %723 = vmatmul.bf16.gmra.mxu0 %v341
        %v724 = vpop.f32.mrf.mxu0
        %v725 = vadd.f32 %v525, %v724
        %v726 = vpop.f32.mrf.mxu0
        %v727 = vadd.f32 %v527, %v726
        %728 = vmatmul.bf16.gmra.mxu0 %v344
        %v729 = vpop.f32.mrf.mxu0
        %v730 = vadd.f32 %v530, %v729
        %v731 = vpop.f32.mrf.mxu0
        %v732 = vadd.f32 %v532, %v731
        %733 = vdwg.mxu0
        %v734 = vld [vmem:[%s169 + $0x10] sm:$0xf]
        %v735 = vld [vmem:[%s169 + $0x14] sm:$0xf]
        %v736 = vld [vmem:[%s169 + $0x18] sm:$0xf]
        %v737 = vld [vmem:[%s169 + $0x1c] sm:$0xf]
        %v738 = vld [vmem:[%s169 + $0x20] sm:$0xf]
        %v739 = vld [vmem:[%s169 + $0x24] sm:$0xf]
        %v740 = vld [vmem:[%s169 + $0x28] sm:$0xf]
        %v741 = vld [vmem:[%s169 + $0x2c] sm:$0xf]
        %v742 = vld [vmem:[%s169 + $0x30] sm:$0xf]
        %v743 = vld [vmem:[%s169 + $0x34] sm:$0xf]
        %v744 = vld [vmem:[%s169 + $0x38] sm:$0xf]
        %v745 = vld [vmem:[%s169 + $0x3c] sm:$0xf]
        %v746 = vld [vmem:[%s169 + $0x40] sm:$0xf]
        %v747 = vld [vmem:[%s169 + $0x44] sm:$0xf]
        %v748 = vld [vmem:[%s169 + $0x48] sm:$0xf]
        %v749 = vld [vmem:[%s169 + $0x4c] sm:$0xf]
        %v750 = vld [vmem:[%s169 + $0x50] sm:$0xf]
        %v751 = vld [vmem:[%s169 + $0x54] sm:$0xf]
        %v752 = vld [vmem:[%s169 + $0x58] sm:$0xf]
        %v753 = vld [vmem:[%s169 + $0x5c] sm:$0xf]
        %v754 = vld [vmem:[%s169 + $0x60] sm:$0xf]
        %v755 = vld [vmem:[%s169 + $0x64] sm:$0xf]
        %v756 = vld [vmem:[%s169 + $0x68] sm:$0xf]
        %v757 = vld [vmem:[%s169 + $0x6c] sm:$0xf]
        %v758 = vld [vmem:[%s169 + $0x70] sm:$0xf]
        %v759 = vld [vmem:[%s169 + $0x74] sm:$0xf]
        %v760 = vld [vmem:[%s169 + $0x78] sm:$0xf]
        %v761 = vld [vmem:[%s169 + $0x7c] sm:$0xf]
        %v762 = vld [vmem:[%s169 + $0x80] sm:$0xf]
        %v763 = vld [vmem:[%s169 + $0x84] sm:$0xf]
        %v764 = vld [vmem:[%s169 + $0x88] sm:$0xf]
        %v765 = vld [vmem:[%s169 + $0x8c] sm:$0xf]
        %s766 = scalar_lea.vmem %s1, 32
        %v767 = vld [vmem:[%s766] sm:$0xff]
        %v768 = vld [vmem:[%s766 + $0x8] sm:$0x33]
        %v801 = vunpack.c.l.b16 %v734
        %v802 = vunpack.c.l.b16 %v735
        %v803 = vunpack.c.l.b16 %v736
        %v804 = vunpack.c.l.b16 %v737
        %v805 = vunpack.c.l.b16 %v738
        %v806 = vunpack.c.l.b16 %v739
        %v807 = vunpack.c.l.b16 %v740
        %v808 = vunpack.c.l.b16 %v741
        %v809 = vunpack.c.l.b16 %v742
        %v810 = vunpack.c.l.b16 %v743
        %v811 = vunpack.c.l.b16 %v744
        %v812 = vunpack.c.l.b16 %v745
        %v813 = vunpack.c.l.b16 %v746
        %v814 = vunpack.c.l.b16 %v747
        %v815 = vunpack.c.l.b16 %v748
        %v816 = vunpack.c.l.b16 %v749
        %v817 = vunpack.c.l.b16 %v750
        %v818 = vunpack.c.l.b16 %v751
        %v819 = vunpack.c.l.b16 %v752
        %v820 = vunpack.c.l.b16 %v753
        %v821 = vunpack.c.l.b16 %v754
        %v822 = vunpack.c.l.b16 %v755
        %v823 = vunpack.c.l.b16 %v756
        %v824 = vunpack.c.l.b16 %v757
        %v825 = vunpack.c.l.b16 %v758
        %v826 = vunpack.c.l.b16 %v759
        %v827 = vunpack.c.l.b16 %v760
        %v828 = vunpack.c.l.b16 %v761
        %v829 = vunpack.c.l.b16 %v762
        %v830 = vunpack.c.l.b16 %v763
        %v831 = vunpack.c.l.b16 %v764
        %v832 = vunpack.c.l.b16 %v765
        %v833 = vpack.c.b16 %v802, %v801
        %v834 = vpack.c.b16 %v804, %v803
        %v835 = vpack.c.b16 %v806, %v805
        %v836 = vpack.c.b16 %v808, %v807
        %v837 = vpack.c.b16 %v810, %v809
        %v838 = vpack.c.b16 %v812, %v811
        %v839 = vpack.c.b16 %v814, %v813
        %v840 = vpack.c.b16 %v816, %v815
        %v841 = vpack.c.b16 %v818, %v817
        %v842 = vpack.c.b16 %v820, %v819
        %v843 = vpack.c.b16 %v822, %v821
        %v844 = vpack.c.b16 %v824, %v823
        %v845 = vpack.c.b16 %v826, %v825
        %v846 = vpack.c.b16 %v828, %v827
        %v847 = vpack.c.b16 %v830, %v829
        %v848 = vpack.c.b16 %v832, %v831
        %v851 = vunpack.c.l.b16 %v767
        %v852 = vunpack.c.h.b16 %v767
        %v853 = vunpack.c.l.b16 %v768
        %v854 = vunpack.c.h.b16 %v768
        %v855 = vpack.c.b16 %v853, %v851
        %v856 = vpack.c.b16 %v854, %v852
        %v858 = vsel %vm300, %v833, 0
        %v861 = vsel %vm300, %v834, 0
        %v864 = vsel %vm300, %v835, 0
        %v867 = vsel %vm300, %v836, 0
        %v870 = vsel %vm300, %v837, 0
        %v873 = vsel %vm300, %v838, 0
        %v876 = vsel %vm300, %v839, 0
        %v879 = vsel %vm300, %v840, 0
        %v882 = vsel %vm300, %v841, 0
        %v885 = vsel %vm300, %v842, 0
        %v888 = vsel %vm300, %v843, 0
        %v891 = vsel %vm300, %v844, 0
        %v894 = vsel %vm300, %v845, 0
        %v897 = vsel %vm300, %v846, 0
        %v900 = vsel %vm300, %v847, 0
        %v903 = vsel %vm300, %v848, 0
        %v906 = vsel %vm349, %v855, 0
        %v909 = vsel %vm349, %v856, 0
        %911 = vmatpush.bf16.msra.mxu0 0
        %912 = vmatpush.bf16.msra.mxu0 0
        %913 = vmatpush.bf16.msra.mxu0 0
        %914 = vmatpush.bf16.msra.mxu0 0
        %915 = vmatpush.bf16.msra.mxu0 0
        %916 = vmatpush.bf16.msra.mxu0 0
        %917 = vmatpush.bf16.msra.mxu0 0
        %918 = vmatpush.bf16.msra.mxu0 %v906
        %919 = vmatmul.bf16.gmra.mxu0 %v858
        %v920 = vpop.f32.mrf.mxu0
        %v921 = vadd.f32 0.0, %v920
        %v922 = vpop.f32.mrf.mxu0
        %v923 = vadd.f32 0.0, %v922
        %924 = vmatmul.bf16.gmra.mxu0 %v861
        %v925 = vpop.f32.mrf.mxu0
        %v926 = vadd.f32 0.0, %v925
        %v927 = vpop.f32.mrf.mxu0
        %v928 = vadd.f32 0.0, %v927
        %929 = vmatmul.bf16.gmra.mxu0 %v864
        %v930 = vpop.f32.mrf.mxu0
        %v931 = vadd.f32 0.0, %v930
        %v932 = vpop.f32.mrf.mxu0
        %v933 = vadd.f32 0.0, %v932
        %934 = vmatmul.bf16.gmra.mxu0 %v867
        %v935 = vpop.f32.mrf.mxu0
        %v936 = vadd.f32 0.0, %v935
        %v937 = vpop.f32.mrf.mxu0
        %v938 = vadd.f32 0.0, %v937
        %939 = vmatmul.bf16.gmra.mxu0 %v870
        %v940 = vpop.f32.mrf.mxu0
        %v941 = vadd.f32 0.0, %v940
        %v942 = vpop.f32.mrf.mxu0
        %v943 = vadd.f32 0.0, %v942
        %944 = vmatmul.bf16.gmra.mxu0 %v873
        %v945 = vpop.f32.mrf.mxu0
        %v946 = vadd.f32 0.0, %v945
        %v947 = vpop.f32.mrf.mxu0
        %v948 = vadd.f32 0.0, %v947
        %949 = vmatmul.bf16.gmra.mxu0 %v876
        %v950 = vpop.f32.mrf.mxu0
        %v951 = vadd.f32 0.0, %v950
        %v952 = vpop.f32.mrf.mxu0
        %v953 = vadd.f32 0.0, %v952
        %954 = vmatmul.bf16.gmra.mxu0 %v879
        %v955 = vpop.f32.mrf.mxu0
        %v956 = vadd.f32 0.0, %v955
        %v957 = vpop.f32.mrf.mxu0
        %v958 = vadd.f32 0.0, %v957
        %959 = vmatmul.bf16.gmra.mxu0 %v882
        %v960 = vpop.f32.mrf.mxu0
        %v961 = vadd.f32 0.0, %v960
        %v962 = vpop.f32.mrf.mxu0
        %v963 = vadd.f32 0.0, %v962
        %964 = vmatmul.bf16.gmra.mxu0 %v885
        %v965 = vpop.f32.mrf.mxu0
        %v966 = vadd.f32 0.0, %v965
        %v967 = vpop.f32.mrf.mxu0
        %v968 = vadd.f32 0.0, %v967
        %969 = vmatmul.bf16.gmra.mxu0 %v888
        %v970 = vpop.f32.mrf.mxu0
        %v971 = vadd.f32 0.0, %v970
        %v972 = vpop.f32.mrf.mxu0
        %v973 = vadd.f32 0.0, %v972
        %974 = vmatmul.bf16.gmra.mxu0 %v891
        %v975 = vpop.f32.mrf.mxu0
        %v976 = vadd.f32 0.0, %v975
        %v977 = vpop.f32.mrf.mxu0
        %v978 = vadd.f32 0.0, %v977
        %979 = vmatmul.bf16.gmra.mxu0 %v894
        %v980 = vpop.f32.mrf.mxu0
        %v981 = vadd.f32 0.0, %v980
        %v982 = vpop.f32.mrf.mxu0
        %v983 = vadd.f32 0.0, %v982
        %984 = vmatmul.bf16.gmra.mxu0 %v897
        %v985 = vpop.f32.mrf.mxu0
        %v986 = vadd.f32 0.0, %v985
        %v987 = vpop.f32.mrf.mxu0
        %v988 = vadd.f32 0.0, %v987
        %989 = vmatmul.bf16.gmra.mxu0 %v900
        %v990 = vpop.f32.mrf.mxu0
        %v991 = vadd.f32 0.0, %v990
        %v992 = vpop.f32.mrf.mxu0
        %v993 = vadd.f32 0.0, %v992
        %994 = vmatmul.bf16.gmra.mxu0 %v903
        %v995 = vpop.f32.mrf.mxu0
        %v996 = vadd.f32 0.0, %v995
        %v997 = vpop.f32.mrf.mxu0
        %v998 = vadd.f32 0.0, %v997
        %999 = vdwg.mxu0
        %1000 = vmatpush.bf16.msra.mxu0 0
        %1001 = vmatpush.bf16.msra.mxu0 0
        %1002 = vmatpush.bf16.msra.mxu0 0
        %1003 = vmatpush.bf16.msra.mxu0 0
        %1004 = vmatpush.bf16.msra.mxu0 0
        %1005 = vmatpush.bf16.msra.mxu0 0
        %1006 = vmatpush.bf16.msra.mxu0 0
        %1007 = vmatpush.bf16.msra.mxu0 %v909
        %1008 = vmatmul.bf16.gmra.mxu0 %v858
        %v1009 = vpop.f32.mrf.mxu0
        %v1010 = vadd.f32 0.0, %v1009
        %v1011 = vpop.f32.mrf.mxu0
        %v1012 = vadd.f32 0.0, %v1011
        %1013 = vmatmul.bf16.gmra.mxu0 %v861
        %v1014 = vpop.f32.mrf.mxu0
        %v1015 = vadd.f32 0.0, %v1014
        %v1016 = vpop.f32.mrf.mxu0
        %v1017 = vadd.f32 0.0, %v1016
        %1018 = vmatmul.bf16.gmra.mxu0 %v864
        %v1019 = vpop.f32.mrf.mxu0
        %v1020 = vadd.f32 0.0, %v1019
        %v1021 = vpop.f32.mrf.mxu0
        %v1022 = vadd.f32 0.0, %v1021
        %1023 = vmatmul.bf16.gmra.mxu0 %v867
        %v1024 = vpop.f32.mrf.mxu0
        %v1025 = vadd.f32 0.0, %v1024
        %v1026 = vpop.f32.mrf.mxu0
        %v1027 = vadd.f32 0.0, %v1026
        %1028 = vmatmul.bf16.gmra.mxu0 %v870
        %v1029 = vpop.f32.mrf.mxu0
        %v1030 = vadd.f32 0.0, %v1029
        %v1031 = vpop.f32.mrf.mxu0
        %v1032 = vadd.f32 0.0, %v1031
        %1033 = vmatmul.bf16.gmra.mxu0 %v873
        %v1034 = vpop.f32.mrf.mxu0
        %v1035 = vadd.f32 0.0, %v1034
        %v1036 = vpop.f32.mrf.mxu0
        %v1037 = vadd.f32 0.0, %v1036
        %1038 = vmatmul.bf16.gmra.mxu0 %v876
        %v1039 = vpop.f32.mrf.mxu0
        %v1040 = vadd.f32 0.0, %v1039
        %v1041 = vpop.f32.mrf.mxu0
        %v1042 = vadd.f32 0.0, %v1041
        %1043 = vmatmul.bf16.gmra.mxu0 %v879
        %v1044 = vpop.f32.mrf.mxu0
        %v1045 = vadd.f32 0.0, %v1044
        %v1046 = vpop.f32.mrf.mxu0
        %v1047 = vadd.f32 0.0, %v1046
        %1048 = vmatmul.bf16.gmra.mxu0 %v882
        %v1049 = vpop.f32.mrf.mxu0
        %v1050 = vadd.f32 0.0, %v1049
        %v1051 = vpop.f32.mrf.mxu0
        %v1052 = vadd.f32 0.0, %v1051
        %1053 = vmatmul.bf16.gmra.mxu0 %v885
        %v1054 = vpop.f32.mrf.mxu0
        %v1055 = vadd.f32 0.0, %v1054
        %v1056 = vpop.f32.mrf.mxu0
        %v1057 = vadd.f32 0.0, %v1056
        %1058 = vmatmul.bf16.gmra.mxu0 %v888
        %v1059 = vpop.f32.mrf.mxu0
        %v1060 = vadd.f32 0.0, %v1059
        %v1061 = vpop.f32.mrf.mxu0
        %v1062 = vadd.f32 0.0, %v1061
        %1063 = vmatmul.bf16.gmra.mxu0 %v891
        %v1064 = vpop.f32.mrf.mxu0
        %v1065 = vadd.f32 0.0, %v1064
        %v1066 = vpop.f32.mrf.mxu0
        %v1067 = vadd.f32 0.0, %v1066
        %1068 = vmatmul.bf16.gmra.mxu0 %v894
        %v1069 = vpop.f32.mrf.mxu0
        %v1070 = vadd.f32 0.0, %v1069
        %v1071 = vpop.f32.mrf.mxu0
        %v1072 = vadd.f32 0.0, %v1071
        %1073 = vmatmul.bf16.gmra.mxu0 %v897
        %v1074 = vpop.f32.mrf.mxu0
        %v1075 = vadd.f32 0.0, %v1074
        %v1076 = vpop.f32.mrf.mxu0
        %v1077 = vadd.f32 0.0, %v1076
        %1078 = vmatmul.bf16.gmra.mxu0 %v900
        %v1079 = vpop.f32.mrf.mxu0
        %v1080 = vadd.f32 0.0, %v1079
        %v1081 = vpop.f32.mrf.mxu0
        %v1082 = vadd.f32 0.0, %v1081
        %1083 = vmatmul.bf16.gmra.mxu0 %v903
        %v1084 = vpop.f32.mrf.mxu0
        %v1085 = vadd.f32 0.0, %v1084
        %v1086 = vpop.f32.mrf.mxu0
        %v1087 = vadd.f32 0.0, %v1086
        %1088 = vdwg.mxu0
        %v1089 = vadd.f32 %v566, %v921
        %v1090 = vadd.f32 %v655, %v1010
        %v1091 = vadd.f32 %v568, %v923
        %v1092 = vadd.f32 %v657, %v1012
        %v1093 = vadd.f32 %v571, %v926
        %v1094 = vadd.f32 %v660, %v1015
        %v1095 = vadd.f32 %v573, %v928
        %v1096 = vadd.f32 %v662, %v1017
        %v1097 = vadd.f32 %v576, %v931
        %v1098 = vadd.f32 %v665, %v1020
        %v1099 = vadd.f32 %v578, %v933
        %v1100 = vadd.f32 %v667, %v1022
        %v1101 = vadd.f32 %v581, %v936
        %v1102 = vadd.f32 %v670, %v1025
        %v1103 = vadd.f32 %v583, %v938
        %v1104 = vadd.f32 %v672, %v1027
        %v1105 = vadd.f32 %v586, %v941
        %v1106 = vadd.f32 %v675, %v1030
        %v1107 = vadd.f32 %v588, %v943
        %v1108 = vadd.f32 %v677, %v1032
        %v1109 = vadd.f32 %v591, %v946
        %v1110 = vadd.f32 %v680, %v1035
        %v1111 = vadd.f32 %v593, %v948
        %v1112 = vadd.f32 %v682, %v1037
        %v1113 = vadd.f32 %v596, %v951
        %v1114 = vadd.f32 %v685, %v1040
        %v1115 = vadd.f32 %v598, %v953
        %v1116 = vadd.f32 %v687, %v1042
        %v1117 = vadd.f32 %v601, %v956
        %v1118 = vadd.f32 %v690, %v1045
        %v1119 = vadd.f32 %v603, %v958
        %v1120 = vadd.f32 %v692, %v1047
        %v1121 = vadd.f32 %v606, %v961
        %v1122 = vadd.f32 %v695, %v1050
        %v1123 = vadd.f32 %v608, %v963
        %v1124 = vadd.f32 %v697, %v1052
        %v1125 = vadd.f32 %v611, %v966
        %v1126 = vadd.f32 %v700, %v1055
        %v1127 = vadd.f32 %v613, %v968
        %v1128 = vadd.f32 %v702, %v1057
        %v1129 = vadd.f32 %v616, %v971
        %v1130 = vadd.f32 %v705, %v1060
        %v1131 = vadd.f32 %v618, %v973
        %v1132 = vadd.f32 %v707, %v1062
        %v1133 = vadd.f32 %v621, %v976
        %v1134 = vadd.f32 %v710, %v1065
        %v1135 = vadd.f32 %v623, %v978
        %v1136 = vadd.f32 %v712, %v1067
        %v1137 = vadd.f32 %v626, %v981
        %v1138 = vadd.f32 %v715, %v1070
        %v1139 = vadd.f32 %v628, %v983
        %v1140 = vadd.f32 %v717, %v1072
        %v1141 = vadd.f32 %v631, %v986
        %v1142 = vadd.f32 %v720, %v1075
        %v1143 = vadd.f32 %v633, %v988
        %v1144 = vadd.f32 %v722, %v1077
        %v1145 = vadd.f32 %v636, %v991
        %v1146 = vadd.f32 %v725, %v1080
        %v1147 = vadd.f32 %v638, %v993
        %v1148 = vadd.f32 %v727, %v1082
        %v1149 = vadd.f32 %v641, %v996
        %v1150 = vadd.f32 %v730, %v1085
        %v1151 = vadd.f32 %v643, %v998
        %v1152 = vadd.f32 %v732, %v1087
        %v1153 = vld [vmem:[%s2] sm:$0x3]
        %v1155 = vperm.slane %v1153, 0
        %v1156 = vperm.slane %v1153, 1
        %v1159 = vadd.f32 %v1089, %v1155
        %v1160 = vadd.f32 %v1090, %v1156
        %v1161 = vadd.f32 %v1091, %v1155
        %v1162 = vadd.f32 %v1092, %v1156
        %v1163 = vadd.f32 %v1093, %v1155
        %v1164 = vadd.f32 %v1094, %v1156
        %v1165 = vadd.f32 %v1095, %v1155
        %v1166 = vadd.f32 %v1096, %v1156
        %v1167 = vadd.f32 %v1097, %v1155
        %v1168 = vadd.f32 %v1098, %v1156
        %v1169 = vadd.f32 %v1099, %v1155
        %v1170 = vadd.f32 %v1100, %v1156
        %v1171 = vadd.f32 %v1101, %v1155
        %v1172 = vadd.f32 %v1102, %v1156
        %v1173 = vadd.f32 %v1103, %v1155
        %v1174 = vadd.f32 %v1104, %v1156
        %v1175 = vadd.f32 %v1105, %v1155
        %v1176 = vadd.f32 %v1106, %v1156
        %v1177 = vadd.f32 %v1107, %v1155
        %v1178 = vadd.f32 %v1108, %v1156
        %v1179 = vadd.f32 %v1109, %v1155
        %v1180 = vadd.f32 %v1110, %v1156
        %v1181 = vadd.f32 %v1111, %v1155
        %v1182 = vadd.f32 %v1112, %v1156
        %v1183 = vadd.f32 %v1113, %v1155
        %v1184 = vadd.f32 %v1114, %v1156
        %v1185 = vadd.f32 %v1115, %v1155
        %v1186 = vadd.f32 %v1116, %v1156
        %v1187 = vadd.f32 %v1117, %v1155
        %v1188 = vadd.f32 %v1118, %v1156
        %v1189 = vadd.f32 %v1119, %v1155
        %v1190 = vadd.f32 %v1120, %v1156
        %v1191 = vadd.f32 %v1121, %v1155
        %v1192 = vadd.f32 %v1122, %v1156
        %v1193 = vadd.f32 %v1123, %v1155
        %v1194 = vadd.f32 %v1124, %v1156
        %v1195 = vadd.f32 %v1125, %v1155
        %v1196 = vadd.f32 %v1126, %v1156
        %v1197 = vadd.f32 %v1127, %v1155
        %v1198 = vadd.f32 %v1128, %v1156
        %v1199 = vadd.f32 %v1129, %v1155
        %v1200 = vadd.f32 %v1130, %v1156
        %v1201 = vadd.f32 %v1131, %v1155
        %v1202 = vadd.f32 %v1132, %v1156
        %v1203 = vadd.f32 %v1133, %v1155
        %v1204 = vadd.f32 %v1134, %v1156
        %v1205 = vadd.f32 %v1135, %v1155
        %v1206 = vadd.f32 %v1136, %v1156
        %v1207 = vadd.f32 %v1137, %v1155
        %v1208 = vadd.f32 %v1138, %v1156
        %v1209 = vadd.f32 %v1139, %v1155
        %v1210 = vadd.f32 %v1140, %v1156
        %v1211 = vadd.f32 %v1141, %v1155
        %v1212 = vadd.f32 %v1142, %v1156
        %v1213 = vadd.f32 %v1143, %v1155
        %v1214 = vadd.f32 %v1144, %v1156
        %v1215 = vadd.f32 %v1145, %v1155
        %v1216 = vadd.f32 %v1146, %v1156
        %v1217 = vadd.f32 %v1147, %v1155
        %v1218 = vadd.f32 %v1148, %v1156
        %v1219 = vadd.f32 %v1149, %v1155
        %v1220 = vadd.f32 %v1150, %v1156
        %v1221 = vadd.f32 %v1151, %v1155
        %v1222 = vadd.f32 %v1152, %v1156
        %v1223 = vmax.f32 %v1159, 0.0
        %v1224 = vmax.f32 %v1161, 0.0
        %v1225 = vmax.f32 %v1163, 0.0
        %v1226 = vmax.f32 %v1165, 0.0
        %v1227 = vmax.f32 %v1167, 0.0
        %v1228 = vmax.f32 %v1169, 0.0
        %v1229 = vmax.f32 %v1171, 0.0
        %v1230 = vmax.f32 %v1173, 0.0
        %v1231 = vmax.f32 %v1175, 0.0
        %v1232 = vmax.f32 %v1177, 0.0
        %v1233 = vmax.f32 %v1179, 0.0
        %v1234 = vmax.f32 %v1181, 0.0
        %v1235 = vmax.f32 %v1183, 0.0
        %v1236 = vmax.f32 %v1185, 0.0
        %v1237 = vmax.f32 %v1187, 0.0
        %v1238 = vmax.f32 %v1189, 0.0
        %v1239 = vmax.f32 %v1191, 0.0
        %v1240 = vmax.f32 %v1193, 0.0
        %v1241 = vmax.f32 %v1195, 0.0
        %v1242 = vmax.f32 %v1197, 0.0
        %v1243 = vmax.f32 %v1199, 0.0
        %v1244 = vmax.f32 %v1201, 0.0
        %v1245 = vmax.f32 %v1203, 0.0
        %v1246 = vmax.f32 %v1205, 0.0
        %v1247 = vmax.f32 %v1207, 0.0
        %v1248 = vmax.f32 %v1209, 0.0
        %v1249 = vmax.f32 %v1211, 0.0
        %v1250 = vmax.f32 %v1213, 0.0
        %v1251 = vmax.f32 %v1215, 0.0
        %v1252 = vmax.f32 %v1217, 0.0
        %v1253 = vmax.f32 %v1219, 0.0
        %v1254 = vmax.f32 %v1221, 0.0
        %v1255 = vadd.f32 %v1223, %v1160
        %v1256 = vadd.f32 %v1224, %v1162
        %v1257 = vadd.f32 %v1225, %v1164
        %v1258 = vadd.f32 %v1226, %v1166
        %v1259 = vadd.f32 %v1227, %v1168
        %v1260 = vadd.f32 %v1228, %v1170
        %v1261 = vadd.f32 %v1229, %v1172
        %v1262 = vadd.f32 %v1230, %v1174
        %v1263 = vadd.f32 %v1231, %v1176
        %v1264 = vadd.f32 %v1232, %v1178
        %v1265 = vadd.f32 %v1233, %v1180
        %v1266 = vadd.f32 %v1234, %v1182
        %v1267 = vadd.f32 %v1235, %v1184
        %v1268 = vadd.f32 %v1236, %v1186
        %v1269 = vadd.f32 %v1237, %v1188
        %v1270 = vadd.f32 %v1238, %v1190
        %v1271 = vadd.f32 %v1239, %v1192
        %v1272 = vadd.f32 %v1240, %v1194
        %v1273 = vadd.f32 %v1241, %v1196
        %v1274 = vadd.f32 %v1242, %v1198
        %v1275 = vadd.f32 %v1243, %v1200
        %v1276 = vadd.f32 %v1244, %v1202
        %v1277 = vadd.f32 %v1245, %v1204
        %v1278 = vadd.f32 %v1246, %v1206
        %v1279 = vadd.f32 %v1247, %v1208
        %v1280 = vadd.f32 %v1248, %v1210
        %v1281 = vadd.f32 %v1249, %v1212
        %v1282 = vadd.f32 %v1250, %v1214
        %v1283 = vadd.f32 %v1251, %v1216
        %v1284 = vadd.f32 %v1252, %v1218
        %v1285 = vadd.f32 %v1253, %v1220
        %v1286 = vadd.f32 %v1254, %v1222
        %1287 = vst [vmem:[%s164] sm:$0xff] %v1255
        %1288 = vst [vmem:[%s164 + $0x8] sm:$0xff] %v1256
        %1289 = vst [vmem:[%s164 + $0x10] sm:$0xff] %v1257
        %1290 = vst [vmem:[%s164 + $0x18] sm:$0xff] %v1258
        %1291 = vst [vmem:[%s164 + $0x20] sm:$0xff] %v1259
        %1292 = vst [vmem:[%s164 + $0x28] sm:$0xff] %v1260
        %1293 = vst [vmem:[%s164 + $0x30] sm:$0xff] %v1261
        %1294 = vst [vmem:[%s164 + $0x38] sm:$0xff] %v1262
        %1295 = vst [vmem:[%s164 + $0x40] sm:$0xff] %v1263
        %1296 = vst [vmem:[%s164 + $0x48] sm:$0xff] %v1264
        %1297 = vst [vmem:[%s164 + $0x50] sm:$0xff] %v1265
        %1298 = vst [vmem:[%s164 + $0x58] sm:$0xff] %v1266
        %1299 = vst [vmem:[%s164 + $0x60] sm:$0xff] %v1267
        %1300 = vst [vmem:[%s164 + $0x68] sm:$0xff] %v1268
        %1301 = vst [vmem:[%s164 + $0x70] sm:$0xff] %v1269
        %1302 = vst [vmem:[%s164 + $0x78] sm:$0xff] %v1270
        %1303 = vst [vmem:[%s164 + $0x80] sm:$0xff] %v1271
        %1304 = vst [vmem:[%s164 + $0x88] sm:$0xff] %v1272
        %1305 = vst [vmem:[%s164 + $0x90] sm:$0xff] %v1273
        %1306 = vst [vmem:[%s164 + $0x98] sm:$0xff] %v1274
        %1307 = vst [vmem:[%s164 + $0xa0] sm:$0xff] %v1275
        %1308 = vst [vmem:[%s164 + $0xa8] sm:$0xff] %v1276
        %1309 = vst [vmem:[%s164 + $0xb0] sm:$0xff] %v1277
        %1310 = vst [vmem:[%s164 + $0xb8] sm:$0xff] %v1278
        %1311 = vst [vmem:[%s164 + $0xc0] sm:$0xff] %v1279
        %1312 = vst [vmem:[%s164 + $0xc8] sm:$0xff] %v1280
        %1313 = vst [vmem:[%s164 + $0xd0] sm:$0xff] %v1281
        %1314 = vst [vmem:[%s164 + $0xd8] sm:$0xff] %v1282
        %1315 = vst [vmem:[%s164 + $0xe0] sm:$0xff] %v1283
        %1316 = vst [vmem:[%s164 + $0xe8] sm:$0xff] %v1284
        %1317 = vst [vmem:[%s164 + $0xf0] sm:$0xff] %v1285
        %1318 = vst [vmem:[%s164 + $0xf8] sm:$0xff] %v1286
        %s1319 = sand.u32 %s93, 1
        %s1320 = scalar_lea.sflag [#allocation3], %s1319
        %s1321 = sand.u32 %s93, 1
        %s1322 = smul.addr %s1321, 256
        %s1323 = scalar_lea.vmem [#allocation2], %s1322
        // Predicated region
        $region33: #{tpu_custom_call.1} parent=31 // pred_check
          %p1324 = pneg %p103
        $region34: #{tpu_custom_call.1} parent=31 // pred_check_branch
          %1326 = sbr.rel (%p1324) target = $region36
        $region35: #{tpu_custom_call.1} parent=31 // pred_region
          %s1327 = smul.u32 32, %s17
          %1329 = vsyncadd %s1320, 0
          %s1330 = smul.addr %s1327, 8
          %s1331 = scalar_lea.hbm %s3, %s1330
          %s1332 = sshll.u32 %s1323, 4
          %s1333 = int_to_ptr.vmem [resolvable:$true] %s1332
          %s1334 = sshll.u32 %s1331, 4
          %s1335 = int_to_ptr.hbm [resolvable:$true] %s1334
          %1340 = dma.vmem_to_hbm [thread:$0]  %s1333, 4096, %s1335, %s1320, 128, 128, 8
        $region36: #{tpu_custom_call.1} parent=31 // pred_fallthru
          _
      $region32: #{tpu_custom_call.1} parent=5 // pred_fallthru
        _
      %p1341 = scmp.le.s32.totalorder 2, %s12
      // Predicated region
      $region37: #{tpu_custom_call.1} parent=5 // pred_check
        %p1342 = pneg %p1341
      $region38: #{tpu_custom_call.1} parent=5 // pred_check_branch
        %1344 = sbr.rel (%p1342) target = $region40
      $region39: #{tpu_custom_call.1} parent=5 // pred_region
        %s1345 = ssub.s32 %s12, 2
        // Predicated region
        $region41: #{tpu_custom_call.1} parent=39 // pred_check
          %p1346 = pneg %p109
        $region42: #{tpu_custom_call.1} parent=39 // pred_check_branch
          %1348 = sbr.rel (%p1346) target = $region44
        $region43: #{tpu_custom_call.1} parent=39 // pred_region
          %s1349 = sand.u32 %s94, 1
          %s1350 = scalar_lea.sflag [#allocation3], %s1349
          %s1351 = sand.u32 %s94, 1
          %s1352 = smul.addr %s1351, 256
          %s1353 = scalar_lea.vmem [#allocation2], %s1352
          %1355 = dma.done %s1350, 4096
        $region44: #{tpu_custom_call.1} parent=39 // pred_fallthru
          _
      $region40: #{tpu_custom_call.1} parent=5 // pred_fallthru
        _
    $region6: #{tpu_custom_call.1} parent=1 // loop_footer
      %s16 = sadd.s32 1, %s12
    $region7: #{tpu_custom_call.1} parent=1 // loop_footer_branch
      %11 = sbr.rel target = $region3
    $region8: #{tpu_custom_call.1} parent=1 // loop_exit
      _
    %1356 = vsyncpa [#allocation3], 1
    %s1357 = scalar_lea.sflag [#allocation3], 1
    %1358 = vsyncpa %s1357, 1

</llo_original>
